<compile_context>
chip_gen: v6e
topology: v6e:2x2x1
jax: 0.10.0
libtpu: 0.0.40
codegen_flags: <defaults>
</compile_context>

<pallas_src>
import functools

import numpy as np
import jax
import jax.numpy as jnp
from jax.experimental import pallas as pl
from jax.experimental.pallas import tpu as pltpu


def make_pe(d_model: int, max_len: int = 17028, dtype=jnp.float32) -> jnp.ndarray:
    """Sinusoidal positional-encoding buffer, shape (max_len, 1, d_model)."""
    position = np.arange(max_len, dtype=np.float32)[:, None]                    # (max_len, 1)
    div_term = np.exp(
        np.arange(0, d_model, 2, dtype=np.float32) * (-np.log(10000.0) / d_model)
    )
    pe = np.zeros((max_len, d_model), dtype=np.float32)
    pe[:, 0::2] = np.sin(position * div_term)
    pe[:, 1::2] = np.cos(position * div_term)
    return jnp.asarray(pe[:, None, :], dtype)                                   # (max_len, 1, d_model)


# ---------------------------------------------------------------------------
# Kernels (operate on the lane-dense 2-D view (rows, B*D)).
# ---------------------------------------------------------------------------

def _pe_eval_kernel(x_ref, pe_ref, o_ref, *, batch: int):
    # x_ref: (TS, B*D), pe_ref: (TS or 1, D) -> tile across batch in-kernel.
    pe_row = jnp.tile(pe_ref[...], (1, batch))          # (rows, B*D); XLU, cheap
    o_ref[...] = (x_ref[...] + pe_row).astype(o_ref.dtype)


def _pe_train_kernel(x_ref, pe_ref, bits_ref, o_ref, *, batch: int, p: float):
    pe_row = jnp.tile(pe_ref[...], (1, batch))
    y = x_ref[...] + pe_row
    # Inverted dropout: drop w.p. p, scale survivors by 1/(1-p).
    # Integer-threshold compare on raw uint32 bits (no float conversion).
    threshold = jnp.uint32(min(int(round(p * 4294967296.0)), 4294967295))
    keep = bits_ref[...] >= threshold
    scale = jnp.asarray(1.0 / (1.0 - p), dtype=y.dtype)
    y = jnp.where(keep, y, jnp.zeros_like(y)) * scale
    o_ref[...] = y.astype(o_ref.dtype)


# ---------------------------------------------------------------------------
# Wrapper
# ---------------------------------------------------------------------------

def _choose_tile_rows(n_rows: int, row_bytes: int, target_bytes: int = 2 << 20) -> int:
    """Biggest row-tile <= ~target_bytes; multiple of 8 (sublane) unless full."""
    ts = max(1, target_bytes // max(int(row_bytes), 1))
    if ts >= n_rows:
        return int(n_rows)
    # second-to-last block dim must be a multiple of 8 (or the full dim).
    return int(max(8, (ts // 8) * 8))


def positional_encoding_forward(
    x: jnp.ndarray,
    pe: jnp.ndarray,
    *,
    dropout_p: float = 0.1,
    training: bool = False,
    seed: int = 0,
) -> jnp.ndarray:
    """out = dropout(x + pe[:x.shape[1], :, :]), faithful to the PyTorch module."""
    S, B, D = x.shape
    L = B                                   # the module slices pe[: x.size(1)]
    if not (L == S or L == 1):
        # PyTorch's broadcast would change x's shape here; not supported.
        raise NotImplementedError(
            f"pe[:{L}] does not broadcast shape-preservingly with x{x.shape}"
        )

    use_dropout = bool(training) and float(dropout_p) > 0.0
    if use_dropout and float(dropout_p) >= 1.0:
        return jnp.zeros_like(x)

    BD = B * D
    x2 = x.reshape(S, BD)                               # lane-dense view (free reshape)
    pe2 = pe[:L, 0, :].astype(x.dtype)                  # (L, D), tiny read stream

    itemsize = jnp.dtype(x.dtype).itemsize
    ts = _choose_tile_rows(S, BD * itemsize)            # ~2 MiB per x/out tile
    grid = (pl.cdiv(S, ts),)

    x_spec = pl.BlockSpec((ts, BD), lambda i: (i, 0))
    out_spec = pl.BlockSpec((ts, BD), lambda i: (i, 0))
    if L == S:
        pe_spec = pl.BlockSpec((ts, D), lambda i: (i, 0))
    else:  # L == 1: every position gets pe[0]
        pe_spec = pl.BlockSpec((1, D), lambda i: (0, 0))

    compiler_params = pltpu.CompilerParams(
        dimension_semantics=("parallel",),              # independent tiles; lets v7x use both TCs
        vmem_limit_bytes=32 * 1024 * 1024,              # safe on v5e/v6e/v7x for these tile sizes
    )
    out_shape = jax.ShapeDtypeStruct((S, BD), x.dtype)

    if use_dropout:
        bits = jax.random.bits(jax.random.PRNGKey(seed), (S, BD), dtype=jnp.uint32)
        bits_spec = pl.BlockSpec((ts, BD), lambda i: (i, 0))
        kernel = functools.partial(_pe_train_kernel, batch=B, p=float(dropout_p))
        out2 = pl.pallas_call(
            kernel,
            out_shape=out_shape,
            grid=grid,
            in_specs=[x_spec, pe_spec, bits_spec],
            out_specs=out_spec,
            compiler_params=compiler_params,
        )(x2, pe2, bits)
    else:
        kernel = functools.partial(_pe_eval_kernel, batch=B)
        out2 = pl.pallas_call(
            kernel,
            out_shape=out_shape,
            grid=grid,
            in_specs=[x_spec, pe_spec],
            out_specs=out_spec,
            compiler_params=compiler_params,
        )(x2, pe2)

    return out2.reshape(S, B, D)


if __name__ == "__main__":
    key = jax.random.PRNGKey(0)
    S, B, D = 8, 8, 32          # seq_len, batch, d_model (S == B so the module's
                                # pe[:x.size(1)] slice is well-defined & shape-preserving)
    x = jax.random.normal(key, (S, B, D), dtype=jnp.float32)
    pe = make_pe(D)             # (17028, 1, 32)

    # Eval mode (dropout = identity): must match the reference exactly.
    out = jax.block_until_ready(
        positional_encoding_forward(x, pe, dropout_p=0.1, training=False)
    )
    ref = x + pe[:B, :, :]
    assert out.shape == ref.shape and out.dtype == ref.dtype
    assert jnp.allclose(out, ref, atol=1e-6), "eval mismatch vs. reference"

    # Training mode: every output element must be 0 (dropped) or ref/(1-p) (kept, scaled).
    p = 0.1
    out_tr = jax.block_until_ready(
        positional_encoding_forward(x, pe, dropout_p=p, training=True, seed=123)
    )
    assert out_tr.shape == ref.shape
    assert bool(jnp.all(jnp.isfinite(out_tr)))
    scaled = ref / (1.0 - p)
    ok = jnp.logical_or(out_tr == 0.0, jnp.abs(out_tr - scaled) < 1e-5)
    assert bool(jnp.all(ok)), "training values must be 0 or ref/(1-p)"

    print("KERNEL_OK")
</pallas_src>

<mosaic_0001>
module attributes {stable_mosaic.version = 11 : i64} {
  func.func @_pe_eval_kernel(%arg0: i32, %arg1: memref<8x256xf32, #tpu.memory_space<vmem>>, %arg2: memref<8x32xf32, #tpu.memory_space<vmem>>, %arg3: memref<8x256xf32, #tpu.memory_space<vmem>>) attributes {dimension_semantics = [#tpu.dimension_semantics<parallel>], iteration_bounds = array<i64: 1>, scalar_prefetch = 0 : i64, scratch_operands = 0 : i64, tpu.core_type = #tpu.core_type<tc>, window_params = [{transform_indices = @transform_0, window_bounds = array<i64: 8, 256>}, {transform_indices = @transform_1, window_bounds = array<i64: 8, 32>}, {transform_indices = @transform_2, window_bounds = array<i64: 8, 256>}]} {
    %c0 = arith.constant 0 : index
    %c0_0 = arith.constant 0 : index
    %0 = vector.load %arg2[%c0, %c0_0] : memref<8x32xf32, #tpu.memory_space<vmem>>, vector<8x32xf32>
    %1 = tpu.concatenate %0, %0, %0, %0, %0, %0, %0, %0 in 1 : vector<8x32xf32>, vector<8x32xf32>, vector<8x32xf32>, vector<8x32xf32>, vector<8x32xf32>, vector<8x32xf32>, vector<8x32xf32>, vector<8x32xf32> -> vector<8x256xf32>
    %c0_1 = arith.constant 0 : index
    %c0_2 = arith.constant 0 : index
    %2 = vector.load %arg1[%c0_1, %c0_2] : memref<8x256xf32, #tpu.memory_space<vmem>>, vector<8x256xf32>
    %3 = arith.addf %2, %1 : vector<8x256xf32>
    %c0_3 = arith.constant 0 : index
    %c0_4 = arith.constant 0 : index
    %4 = vector.load %arg3[%c0_3, %c0_4] : memref<8x256xf32, #tpu.memory_space<vmem>>, vector<8x256xf32>
    tpu.vector_store %arg3[%c0_3, %c0_4], %3 {strides = array<i32>} : memref<8x256xf32, #tpu.memory_space<vmem>>, vector<8x256xf32>,
    return
  }
  func.func @transform_0(%arg0: i32) -> (i32, i32) {
    %c0_i32 = arith.constant 0 : i32
    %c0_i32_0 = arith.constant 0 : i32
    return %arg0, %c0_i32 : i32, i32
  }
  func.func @transform_1(%arg0: i32) -> (i32, i32) {
    %c0_i32 = arith.constant 0 : i32
    %c0_i32_0 = arith.constant 0 : i32
    return %arg0, %c0_i32 : i32, i32
  }
  func.func @transform_2(%arg0: i32) -> (i32, i32) {
    %c0_i32 = arith.constant 0 : i32
    %c0_i32_0 = arith.constant 0 : i32
    return %arg0, %c0_i32 : i32, i32
  }
}

</mosaic_0001>

<llo_original>
// kernel: tpu_custom_call.1
$region0: #{tpu_custom_call.1}
  #allocation0 [shape = 'u32[]', space=smem, size = 0x4, offset = 0x4, fixed_abs, tag = 'smem constant byte address 0x4 - core index']
  #allocation1 [shape = 'u32[144,128]{1,0:T(1,128)}', space=vmem, size = 0x12000, scoped, tag = 'internal scratch']
  %s0 = inlined_call_operand.hbm [shape: f32[8,256], index: 0, kind: input, shape index: {}]
  %s1 = inlined_call_operand.hbm [shape: f32[8,32], index: 1, kind: input, shape index: {}]
  %s2 = inlined_call_operand.hbm [shape: f32[8,256], index: 2, kind: output, shape index: {}]
  %s3 = sld [smem:[#allocation0]]
  $region26: #{tpu_custom_call.1} parent=0
    _
  %s5 = ssub.s32 1, %s3
  %s6 = scalar_select 0, %s5, %s3
  $region1: #{tpu_custom_call.1} parent=0
    #allocation2 [shape = 'u8[8192]{0}', space=vmem, size = 0x2000, scoped, tag = 'input window, operand 0, single buffered']
    #allocation3 [shape = 's32[1]{0}', space=sflag, size = 0x4, scoped, tag = 'scoped memory for tpu_custom_call.1']
    #allocation4 [shape = 's32[1]{0}', space=sflag, size = 0x4, scoped, tag = 'scoped memory for tpu_custom_call.1']
    #allocation5 [shape = 'u8[4096]{0}', space=vmem, size = 0x1000, scoped, tag = 'input window, operand 1, single buffered']
    #allocation6 [shape = 's32[1]{0}', space=sflag, size = 0x4, scoped, tag = 'scoped memory for tpu_custom_call.1']
    #allocation7 [shape = 'u8[8192]{0}', space=vmem, size = 0x2000, scoped, tag = 'output window, operand 0, single buffered']
    %7 = vsyncpa [#allocation3], 0
    %8 = vsyncpa [#allocation6], 0
    %9 = vsyncpa [#allocation4], 0
    // Predicated region
    $region2: #{tpu_custom_call.1} parent=1 // pred_check
      _
    $region3: #{tpu_custom_call.1} parent=1 // pred_check_branch
      %11 = sbr.rel (0) target = $region5
    $region4: #{tpu_custom_call.1} parent=1 // pred_region
      %s13 = ssub.s32 256, 256
      %14 = vsyncadd [#allocation3], %s13
      %s16 = sshll.u32 [#allocation2], 4
      %s17 = int_to_ptr.vmem [resolvable:$true] %s16
      %19 = dma.hbm_to_vmem [thread:$0]  %s0, 256, %s17, [#allocation3]
    $region5: #{tpu_custom_call.1} parent=1 // pred_fallthru
      _
    // Predicated region
    $region6: #{tpu_custom_call.1} parent=1 // pred_check
      _
    $region7: #{tpu_custom_call.1} parent=1 // pred_check_branch
      %21 = sbr.rel (0) target = $region9
    $region8: #{tpu_custom_call.1} parent=1 // pred_region
      %s23 = ssub.s32 128, 128
      %24 = vsyncadd [#allocation6], %s23
      %s26 = sshll.u32 [#allocation5], 4
      %s27 = int_to_ptr.vmem [resolvable:$true] %s26
      %29 = dma.hbm_to_vmem [thread:$0]  %s1, 128, %s27, [#allocation6]
    $region9: #{tpu_custom_call.1} parent=1 // pred_fallthru
      _
    // Predicated region
    $region10: #{tpu_custom_call.1} parent=1 // pred_check
      _
    $region11: #{tpu_custom_call.1} parent=1 // pred_check_branch
      %31 = sbr.rel (0) target = $region13
    $region12: #{tpu_custom_call.1} parent=1 // pred_region
      %32 = dma.done [#allocation3], 256
    $region13: #{tpu_custom_call.1} parent=1 // pred_fallthru
      _
    // Predicated region
    $region14: #{tpu_custom_call.1} parent=1 // pred_check
      _
    $region15: #{tpu_custom_call.1} parent=1 // pred_check_branch
      %34 = sbr.rel (0) target = $region17
    $region16: #{tpu_custom_call.1} parent=1 // pred_region
      %35 = dma.done [#allocation6], 128
    $region17: #{tpu_custom_call.1} parent=1 // pred_fallthru
      _
    %v36 = vld [vmem:[#allocation5] sm:$0xff]
    %38 = vrot.lane.b32.xlu0 %v36, 32
    %v39 = vpop.permute.xlu0 %38
    %41 = vrot.lane.b32.xlu0 %v36, 64
    %v42 = vpop.permute.xlu0 %41
    %44 = vrot.lane.b32.xlu0 %v36, 96
    %v45 = vpop.permute.xlu0 %44
    %vm47 = vcmask 261120
    %v48 = vsel %vm47, %v36, %v39
    %vm49 = vcmask 523264
    %v50 = vsel %vm49, %v48, %v42
    %vm51 = vcmask 785408
    %v52 = vsel %vm51, %v50, %v45
    %v53 = vld [vmem:[#allocation2] sm:$0xff]
    %v54 = vld [vmem:[#allocation2 + $0x8] sm:$0xff]
    %v55 = vadd.f32 %v53, %v52
    %v56 = vadd.f32 %v54, %v52
    %57 = vst [vmem:[#allocation7] sm:$0xff] %v55
    %58 = vst [vmem:[#allocation7 + $0x8] sm:$0xff] %v56
    // Predicated region
    $region18: #{tpu_custom_call.1} parent=1 // pred_check
      _
    $region19: #{tpu_custom_call.1} parent=1 // pred_check_branch
      %60 = sbr.rel (0) target = $region21
    $region20: #{tpu_custom_call.1} parent=1 // pred_region
      %s62 = ssub.s32 256, 256
      %63 = vsyncadd [#allocation4], %s62
      %s65 = sshll.u32 [#allocation7], 4
      %s66 = int_to_ptr.vmem [resolvable:$true] %s65
      %68 = dma.vmem_to_hbm [thread:$0]  %s66, 256, %s2, [#allocation4]
    $region21: #{tpu_custom_call.1} parent=1 // pred_fallthru
      _
    // Predicated region
    $region22: #{tpu_custom_call.1} parent=1 // pred_check
      _
    $region23: #{tpu_custom_call.1} parent=1 // pred_check_branch
      %70 = sbr.rel (0) target = $region25
    $region24: #{tpu_custom_call.1} parent=1 // pred_region
      %71 = dma.done [#allocation4], 256
    $region25: #{tpu_custom_call.1} parent=1 // pred_fallthru
      _
    %72 = vsyncpa [#allocation3], 1
    %73 = vsyncpa [#allocation6], 1
    %74 = vsyncpa [#allocation4], 1

</llo_original>
